<compile_context>
chip_gen: v6e
topology: v6e:2x2x1
jax: 0.10.0
libtpu: 0.0.40
codegen_flags: <defaults>
</compile_context>

<pallas_src>
import functools

import jax
import jax.numpy as jnp
import numpy as np
from jax.experimental import pallas as pl
from jax.experimental.pallas import tpu as pltpu

_LANE = 128      # lane (last-dim) tile / MXU-friendly multiple
_SUBLANE = 8     # sublane tile for f32
_MIB = 1024 * 1024


def _round_up(x, m):
    return ((x + m - 1) // m) * m


# --------------------------------------------------------------------------------------
# One-time hardware / capability queries
# --------------------------------------------------------------------------------------

@functools.lru_cache(maxsize=None)
def _vmem_capacity_bytes():
    """Per-TensorCore VMEM capacity; conservative (v7x-safe) fallback if query fails."""
    try:
        info = pltpu.get_tpu_info()
        cap = getattr(info, "vmem_capacity_bytes", None)
        if cap:
            return int(cap)
    except Exception:
        pass
    return 64 * _MIB


@functools.lru_cache(maxsize=None)
def _single_buffer_weights_supported():
    """Cached one-time probe: can this jax/Mosaic lower pipeline_mode=pl.Buffered(1)?
    (Replaces the old per-call try/except fallback.)"""
    try:
        def _probe_kernel(x_ref, o_ref):
            o_ref[...] = x_ref[...]

        probe = pl.pallas_call(
            _probe_kernel,
            out_shape=jax.ShapeDtypeStruct((_SUBLANE, _LANE), jnp.float32),
            grid=(1,),
            in_specs=[pl.BlockSpec((_SUBLANE, _LANE), lambda i: (0, 0),
                                   pipeline_mode=pl.Buffered(1))],
            out_specs=pl.BlockSpec((_SUBLANE, _LANE), lambda i: (0, 0)),
        )
        jax.jit(probe).lower(jnp.zeros((_SUBLANE, _LANE), jnp.float32)).compile()
        return True
    except Exception:
        return False


# --------------------------------------------------------------------------------------
# Kernels
# --------------------------------------------------------------------------------------

def _sae_kernel_fused(x_ref, w1_ref, w2_ref, lat_ref, rec_ref):
    """Single-mid-tile path: both weight matrices resident in VMEM."""
    x = x_ref[...]
    lat_f32 = jnp.maximum(
        jnp.dot(x, w1_ref[...], preferred_element_type=jnp.float32), 0.0)
    lat_ref[...] = lat_f32.astype(lat_ref.dtype)
    rec_f32 = jnp.maximum(
        jnp.dot(lat_f32.astype(x.dtype), w2_ref[...],
                preferred_element_type=jnp.float32), 0.0)
    rec_ref[...] = rec_f32.astype(rec_ref.dtype)


def _sae_kernel_mid_tiled(x_ref, w1_ref, w2_ref, lat_ref, rec_ref, acc_ref):
    """Mid-dim-tiled path: W1 columns / W2 rows streamed; decoder accumulated in f32."""
    m = pl.program_id(1)

    @pl.when(m == 0)
    def _():
        acc_ref[...] = jnp.zeros_like(acc_ref)

    x = x_ref[...]
    lat_f32 = jnp.maximum(
        jnp.dot(x, w1_ref[...], preferred_element_type=jnp.float32), 0.0)
    lat_ref[...] = lat_f32.astype(lat_ref.dtype)
    acc_ref[...] += jnp.dot(lat_f32.astype(x.dtype), w2_ref[...],
                            preferred_element_type=jnp.float32)

    @pl.when(m == pl.num_programs(1) - 1)
    def _():
        rec_ref[...] = jnp.maximum(acc_ref[...], 0.0).astype(rec_ref.dtype)


# --------------------------------------------------------------------------------------
# Sizing helpers
# --------------------------------------------------------------------------------------

def _working_set_bytes(bm, tk, in_pad, out_pad, itemsize, m_tiles, single_buf):
    """VMEM working set, including cast/accumulator temporaries (see perf review)."""
    w_bufs = 1 if (m_tiles == 1 and single_buf) else 2
    ws = (w_bufs * (in_pad * tk + tk * out_pad) * itemsize   # weight tiles in flight
          + 2 * bm * in_pad * itemsize                        # x input (double buffered)
          + 2 * bm * tk * itemsize                            # latent output tile
          + 2 * bm * out_pad * itemsize                       # recon output tile
          + bm * tk * (4 + itemsize)                          # f32 latent + cast temp
          + bm * out_pad * 4)                                 # f32 recon temp
    if m_tiles > 1:
        ws += bm * out_pad * 4                                # f32 accumulator scratch
    return ws


# --------------------------------------------------------------------------------------
# One-time parameter preparation (do NOT run per forward call)
# --------------------------------------------------------------------------------------

def prepare_params(w_enc, w_dec, *, dtype=None, block_rows=None, mid_block=None):
    """Convert PyTorch nn.Linear weights ([out, in]) to padded [in, out] layout and
    build a tiling plan.  w_enc: [middle, input], w_dec: [output, middle]."""
    middle_dim, input_dim = w_enc.shape
    output_dim, mid2 = w_dec.shape
    assert mid2 == middle_dim

    dtype = jnp.dtype(dtype or w_enc.dtype)
    itemsize = dtype.itemsize

    in_pad = _round_up(input_dim, _LANE)
    mid_pad = _round_up(middle_dim, _LANE)
    out_pad = _round_up(output_dim, _LANE)

    vmem_cap = _vmem_capacity_bytes()
    budget = (3 * vmem_cap) // 4          # working-set budget (~48 MiB v7x, ~96 MiB v5e/v6e)
    vmem_cap_limit = (17 * vmem_cap) // 20  # 85% of capacity: headroom for Mosaic scratch

    if block_rows is None:
        block_rows = 256 if vmem_cap <= 64 * _MIB else 512

    # Planning value of the batch tile (the forward pass may use a smaller one for
    # small batches, which only shrinks the footprint).
    bm_plan = max(_LANE, _round_up(min(block_rows, 4096), _LANE))

    single_buf = _single_buffer_weights_supported()

    if mid_block is not None:
        tk = max(_LANE, _round_up(min(mid_block, mid_pad), _LANE))
    elif _working_set_bytes(bm_plan, mid_pad, in_pad, out_pad, itemsize, 1,
                            single_buf) <= budget:
        tk = mid_pad                         # everything resident, single mid tile
    else:
        # Never starve the MXU by shrinking the batch tile (M dim) below 128:
        # tile the middle dim and stream the weights instead.
        tk = mid_pad
        while tk > _LANE and _working_set_bytes(bm_plan, tk, in_pad, out_pad,
                                                itemsize, 2, single_buf) > budget:
            tk = max(_LANE, _round_up(tk // 2, _LANE))
        # TODO(synk): for extremely wide input/output dims where even tk=128 exceeds the
        # budget, add K/N tiling over in_pad/out_pad with a second accumulator axis.

    mid_pad = _round_up(mid_pad, tk)         # mid tiles must divide evenly

    # One-time transpose + cast + pad (zero padding is exact: ReLU(0) == 0).
    # TODO(synk): on v7x, optionally store the weights as fp8 (native MXU operand) to
    # halve resident-weight VMEM/HBM traffic if the accuracy loss is acceptable.
    w1 = jnp.pad(jnp.transpose(w_enc).astype(dtype),
                 ((0, in_pad - input_dim), (0, mid_pad - middle_dim)))
    w2 = jnp.pad(jnp.transpose(w_dec).astype(dtype),
                 ((0, mid_pad - middle_dim), (0, out_pad - output_dim)))

    return dict(
        w1=w1, w2=w2, dtype=dtype,
        input_dim=input_dim, middle_dim=middle_dim, output_dim=output_dim,
        in_pad=in_pad, mid_pad=mid_pad, out_pad=out_pad,
        tk=tk, block_rows=block_rows,
        vmem_cap_limit=vmem_cap_limit, single_buf=single_buf,
    )


# --------------------------------------------------------------------------------------
# pallas_call builder + forward
# --------------------------------------------------------------------------------------

def _build_call(n_pad, in_pad, mid_pad, out_pad, bm, tk, dtype, single_buf,
                vmem_cap_limit):
    m_tiles = mid_pad // tk
    steps_n = n_pad // bm
    itemsize = jnp.dtype(dtype).itemsize

    needed = _working_set_bytes(bm, tk, in_pad, out_pad, itemsize, m_tiles, single_buf)
    vmem_limit = int(min(max(needed * 5 // 4, 32 * _MIB), vmem_cap_limit))

    flops = 2 * n_pad * (in_pad * mid_pad + mid_pad * out_pad)
    act_bytes = itemsize * n_pad * (in_pad + mid_pad + out_pad)

    if m_tiles == 1:
        # Resident weights, constant block index -> DMA'd exactly once per call.
        wspec_kwargs = {"pipeline_mode": pl.Buffered(1)} if single_buf else {}
        grid = (steps_n,)
        in_specs = [
            pl.BlockSpec((bm, in_pad), lambda i: (i, 0)),
            pl.BlockSpec((in_pad, mid_pad), lambda i: (0, 0), **wspec_kwargs),
            pl.BlockSpec((mid_pad, out_pad), lambda i: (0, 0), **wspec_kwargs),
        ]
        out_specs = [
            pl.BlockSpec((bm, mid_pad), lambda i: (i, 0)),
            pl.BlockSpec((bm, out_pad), lambda i: (i, 0)),
        ]
        scratch_shapes = ()
        kernel = _sae_kernel_fused
        # "parallel" lets the batch tiles shard across v7x's two TensorCores.
        # TODO(synk): verify core sharding on v7x; switch to pltpu.CORE_PARALLEL if not.
        dim_sems = ("parallel",)
        weight_bytes = (in_pad * mid_pad + mid_pad * out_pad) * itemsize
    else:
        grid = (steps_n, m_tiles)
        in_specs = [
            pl.BlockSpec((bm, in_pad), lambda i, m: (i, 0)),      # constant over m
            pl.BlockSpec((in_pad, tk), lambda i, m: (0, m)),      # W1 column tile
            pl.BlockSpec((tk, out_pad), lambda i, m: (m, 0)),     # W2 row tile
        ]
        out_specs = [
            pl.BlockSpec((bm, tk), lambda i, m: (i, m)),          # latent tile
            pl.BlockSpec((bm, out_pad), lambda i, m: (i, 0)),     # recon (accumulated)
        ]
        scratch_shapes = (pltpu.VMEM((bm, out_pad), jnp.float32),)
        kernel = _sae_kernel_mid_tiled
        dim_sems = ("parallel", "arbitrary")
        # Weights are re-streamed once per batch tile.
        weight_bytes = steps_n * (in_pad * mid_pad + mid_pad * out_pad) * itemsize

    cost = pl.CostEstimate(flops=flops, transcendentals=0,
                           bytes_accessed=act_bytes + weight_bytes)

    out_shapes = (
        jax.ShapeDtypeStruct((n_pad, mid_pad), dtype),
        jax.ShapeDtypeStruct((n_pad, out_pad), dtype),
    )

    return pl.pallas_call(
        kernel,
        out_shape=out_shapes,
        grid_spec=pltpu.PrefetchScalarGridSpec(
            num_scalar_prefetch=0,
            grid=grid,
            in_specs=in_specs,
            out_specs=out_specs,
            scratch_shapes=scratch_shapes,
        ),
        compiler_params=pltpu.CompilerParams(
            dimension_semantics=dim_sems,
            vmem_limit_bytes=vmem_limit,
        ),
        cost_estimate=cost,
    )


def my_sae_forward(h0, params, *, block_rows=None):
    """h0: [N, input_dim]; params from prepare_params().  Returns (latent, recon)."""
    n, input_dim = h0.shape
    assert input_dim == params["input_dim"]

    dtype = params["dtype"]
    in_pad = params["in_pad"]
    mid_pad = params["mid_pad"]
    out_pad = params["out_pad"]
    tk = params["tk"]
    block_rows = block_rows if block_rows is not None else params["block_rows"]

    # Batch tile (matmul M dim): multiple of 128 when possible, sublane multiple otherwise.
    bm = min(block_rows, n)
    bm = _round_up(bm, _LANE) if bm >= _LANE else max(_SUBLANE, _round_up(bm, _SUBLANE))
    n_pad = _round_up(n, bm)
    # Give the "parallel" batch axis at least two tiles (v7x has two TensorCores).
    if n_pad // bm < 2 and bm >= 2 * _LANE:
        bm = _round_up(bm // 2, _LANE)
        n_pad = _round_up(n, bm)

    # Pad / cast activations only when actually needed (skip the copy when aligned).
    if (n_pad, in_pad) != (n, input_dim):
        h0_p = jnp.pad(h0, ((0, n_pad - n), (0, in_pad - input_dim)))
    else:
        h0_p = h0
    if h0_p.dtype != dtype:
        h0_p = h0_p.astype(dtype)

    call = _build_call(n_pad, in_pad, mid_pad, out_pad, bm, tk, dtype,
                       params["single_buf"], params["vmem_cap_limit"])
    lat_p, rec_p = call(h0_p, params["w1"], params["w2"])

    latent = lat_p[:n, :params["middle_dim"]]
    recon = rec_p[:n, :params["output_dim"]]
    return latent, recon


# --------------------------------------------------------------------------------------
# Demo / self-check
# --------------------------------------------------------------------------------------

def _init_linear_weight(key, out_dim, in_dim):
    # Deterministic stand-in for PyTorch's kaiming-uniform nn.Linear init.
    bound = 1.0 / np.sqrt(in_dim)
    return jax.random.uniform(key, (out_dim, in_dim), minval=-bound, maxval=bound,
                              dtype=jnp.float32)


if __name__ == "__main__":
    key = jax.random.PRNGKey(0)
    k_x1, k_e1, k_d1, k_x2, k_e2, k_d2 = jax.random.split(key, 6)

    # ---- Case 1: small SAE, fused single-mid-tile path, multi-step batch grid ----
    batch, input_dim, middle_dim, output_dim = 100, 48, 20, 48
    h0 = jax.random.normal(k_x1, (batch, input_dim), dtype=jnp.float32)
    w_enc = _init_linear_weight(k_e1, middle_dim, input_dim)   # nn.Linear weight [out, in]
    w_dec = _init_linear_weight(k_d1, output_dim, middle_dim)

    params = prepare_params(w_enc, w_dec, block_rows=32)       # small tile -> 4-step grid
    latent, recon = my_sae_forward(h0, params)
    latent, recon = jax.block_until_ready((latent, recon))

    lat_ref = jnp.maximum(h0 @ w_enc.T, 0.0)
    rec_ref = jnp.maximum(lat_ref @ w_dec.T, 0.0)
    np.testing.assert_allclose(np.asarray(latent), np.asarray(lat_ref),
                               rtol=1e-5, atol=1e-5)
    np.testing.assert_allclose(np.asarray(recon), np.asarray(rec_ref),
                               rtol=1e-5, atol=1e-5)

    # ---- Case 2: force the mid-tiled accumulator path (3 mid tiles of 128) ----
    batch2, in2, mid2, out2 = 64, 32, 300, 40
    h02 = jax.random.normal(k_x2, (batch2, in2), dtype=jnp.float32)
    w_enc2 = _init_linear_weight(k_e2, mid2, in2)
    w_dec2 = _init_linear_weight(k_d2, out2, mid2)

    params2 = prepare_params(w_enc2, w_dec2, block_rows=64, mid_block=128)
    latent2, recon2 = my_sae_forward(h02, params2)
    latent2, recon2 = jax.block_until_ready((latent2, recon2))

    lat2_ref = jnp.maximum(h02 @ w_enc2.T, 0.0)
    rec2_ref = jnp.maximum(lat2_ref @ w_dec2.T, 0.0)
    np.testing.assert_allclose(np.asarray(latent2), np.asarray(lat2_ref),
                               rtol=1e-4, atol=1e-5)
    np.testing.assert_allclose(np.asarray(recon2), np.asarray(rec2_ref),
                               rtol=1e-4, atol=1e-5)

    print("KERNEL_OK")
</pallas_src>

<mosaic_0001>
module attributes {stable_mosaic.version = 11 : i64} {
  func.func @_sae_kernel_fused(%arg0: i32, %arg1: memref<32x128xf32, #tpu.memory_space<vmem>>, %arg2: memref<128x128xf32, #tpu.memory_space<vmem>>, %arg3: memref<128x128xf32, #tpu.memory_space<vmem>>, %arg4: memref<32x128xf32, #tpu.memory_space<vmem>>, %arg5: memref<32x128xf32, #tpu.memory_space<vmem>>) attributes {dimension_semantics = [#tpu.dimension_semantics<parallel>], iteration_bounds = array<i64: 4>, scalar_prefetch = 0 : i64, scratch_operands = 0 : i64, tpu.core_type = #tpu.core_type<tc>, window_params = [{transform_indices = @transform_0, window_bounds = array<i64: 32, 128>}, {pipeline_mode = #tpu.pipeline_mode<synchronous>, transform_indices = @transform_1, window_bounds = array<i64: 128, 128>}, {pipeline_mode = #tpu.pipeline_mode<synchronous>, transform_indices = @transform_2, window_bounds = array<i64: 128, 128>}, {transform_indices = @transform_3, window_bounds = array<i64: 32, 128>}, {transform_indices = @transform_4, window_bounds = array<i64: 32, 128>}]} {
    %c0 = arith.constant 0 : index
    %c0_0 = arith.constant 0 : index
    %0 = vector.load %arg1[%c0, %c0_0] : memref<32x128xf32, #tpu.memory_space<vmem>>, vector<32x128xf32>
    %c0_1 = arith.constant 0 : index
    %c0_2 = arith.constant 0 : index
    %1 = vector.load %arg2[%c0_1, %c0_2] : memref<128x128xf32, #tpu.memory_space<vmem>>, vector<128x128xf32>
    %cst = arith.constant dense<0.000000e+00> : vector<32x128xf32>
    %2 = tpu.matmul %0, %1, %cst {dimension_numbers = #tpu.dot_dimension_numbers<[1], [0], [0], [1], [0, 0, 1, 1], [], []>} : vector<32x128xf32>, vector<128x128xf32>, vector<32x128xf32> -> vector<32x128xf32>
    %cst_3 = arith.constant 0.000000e+00 : f32
    %3 = vector.broadcast %cst_3 : f32 to vector<32x128xf32>
    %4 = arith.maximumf %2, %3 : vector<32x128xf32>
    %c0_4 = arith.constant 0 : index
    %c0_5 = arith.constant 0 : index
    %5 = vector.load %arg4[%c0_4, %c0_5] : memref<32x128xf32, #tpu.memory_space<vmem>>, vector<32x128xf32>
    tpu.vector_store %arg4[%c0_4, %c0_5], %4 {strides = array<i32>} : memref<32x128xf32, #tpu.memory_space<vmem>>, vector<32x128xf32>,
    %c0_6 = arith.constant 0 : index
    %c0_7 = arith.constant 0 : index
    %6 = vector.load %arg3[%c0_6, %c0_7] : memref<128x128xf32, #tpu.memory_space<vmem>>, vector<128x128xf32>
    %cst_8 = arith.constant dense<0.000000e+00> : vector<32x128xf32>
    %7 = tpu.matmul %4, %6, %cst_8 {dimension_numbers = #tpu.dot_dimension_numbers<[1], [0], [0], [1], [0, 0, 1, 1], [], []>} : vector<32x128xf32>, vector<128x128xf32>, vector<32x128xf32> -> vector<32x128xf32>
    %cst_9 = arith.constant 0.000000e+00 : f32
    %8 = vector.broadcast %cst_9 : f32 to vector<32x128xf32>
    %9 = arith.maximumf %7, %8 : vector<32x128xf32>
    %c0_10 = arith.constant 0 : index
    %c0_11 = arith.constant 0 : index
    %10 = vector.load %arg5[%c0_10, %c0_11] : memref<32x128xf32, #tpu.memory_space<vmem>>, vector<32x128xf32>
    tpu.vector_store %arg5[%c0_10, %c0_11], %9 {strides = array<i32>} : memref<32x128xf32, #tpu.memory_space<vmem>>, vector<32x128xf32>,
    return
  }
  func.func @transform_0(%arg0: i32) -> (i32, i32) {
    %c0_i32 = arith.constant 0 : i32
    %c0_i32_0 = arith.constant 0 : i32
    return %arg0, %c0_i32 : i32, i32
  }
  func.func @transform_1(%arg0: i32) -> (i32, i32) {
    %c0_i32 = arith.constant 0 : i32
    %c0_i32_0 = arith.constant 0 : i32
    %c0_i32_1 = arith.constant 0 : i32
    return %c0_i32, %c0_i32_0 : i32, i32
  }
  func.func @transform_2(%arg0: i32) -> (i32, i32) {
    %c0_i32 = arith.constant 0 : i32
    %c0_i32_0 = arith.constant 0 : i32
    %c0_i32_1 = arith.constant 0 : i32
    return %c0_i32, %c0_i32_0 : i32, i32
  }
  func.func @transform_3(%arg0: i32) -> (i32, i32) {
    %c0_i32 = arith.constant 0 : i32
    %c0_i32_0 = arith.constant 0 : i32
    return %arg0, %c0_i32 : i32, i32
  }
  func.func @transform_4(%arg0: i32) -> (i32, i32) {
    %c0_i32 = arith.constant 0 : i32
    %c0_i32_0 = arith.constant 0 : i32
    return %arg0, %c0_i32 : i32, i32
  }
}

</mosaic_0001>

<llo_original>
// kernel: tpu_custom_call.1
$region0: #{tpu_custom_call.1}
  #allocation0 [shape = 'u32[]', space=smem, size = 0x4, offset = 0x4, fixed_abs, tag = 'smem constant byte address 0x4 - core index']
  #allocation1 [shape = 'u32[144,128]{1,0:T(1,128)}', space=vmem, size = 0x12000, scoped, tag = 'internal scratch']
  %s0 = inlined_call_operand.hbm [shape: f32[128,128], index: 0, kind: input, shape index: {}]
  %s1 = inlined_call_operand.hbm [shape: f32[128,128], index: 1, kind: input, shape index: {}]
  %s2 = inlined_call_operand.hbm [shape: f32[128,128], index: 2, kind: input, shape index: {}]
  %s3 = inlined_call_operand.hbm [shape: f32[128,128], index: 3, kind: output, shape index: {0}]
  %s4 = inlined_call_operand.hbm [shape: f32[128,128], index: 4, kind: output, shape index: {1}]
  %5 = xla_tuple %s3, %s4
  %s6 = sld [smem:[#allocation0]]
  $region65: #{tpu_custom_call.1} parent=0
    _
  %s8 = ssub.s32 1, %s6
  %s9 = scalar_select 0, %s8, %s6
  $region1: #{tpu_custom_call.1} parent=0
    #allocation2 [shape = 'u8[32768]{0}', space=vmem, size = 0x8000, scoped, tag = 'input window, operand 0']
    #allocation3 [shape = 's32[2]{0}', space=sflag, size = 0x8, scoped, tag = 'scoped memory for tpu_custom_call.1']
    #allocation4 [shape = 's32[2]{0}', space=sflag, size = 0x8, scoped, tag = 'scoped memory for tpu_custom_call.1']
    #allocation5 [shape = 'u8[65536]{0}', space=vmem, size = 0x10000, scoped, tag = 'input window, operand 1, single buffered']
    #allocation6 [shape = 's32[1]{0}', space=sflag, size = 0x4, scoped, tag = 'scoped memory for tpu_custom_call.1']
    #allocation7 [shape = 'u8[65536]{0}', space=vmem, size = 0x10000, scoped, tag = 'input window, operand 2, single buffered']
    #allocation8 [shape = 'u8[32768]{0}', space=vmem, size = 0x8000, scoped, tag = 'output window, operand 0']
    #allocation9 [shape = 'u8[32768]{0}', space=vmem, size = 0x8000, scoped, tag = 'output window, operand 1']
    #allocation10 [shape = 's32[2]{0}', space=sflag, size = 0x8, scoped, tag = 'scoped memory for tpu_custom_call.1']
    %10 = vsyncpa [#allocation3], 0
    %s11 = scalar_lea.sflag [#allocation3], 1
    %12 = vsyncpa %s11, 0
    %13 = vsyncpa [#allocation6], 0
    %14 = vsyncpa [#allocation4], 0
    %s15 = scalar_lea.sflag [#allocation4], 1
    %16 = vsyncpa %s15, 0
    %17 = vsyncpa [#allocation10], 0
    %s18 = scalar_lea.sflag [#allocation10], 1
    %19 = vsyncpa %s18, 0
    loop: start=0, step=1, limit=6
    $region2: #{tpu_custom_call.1} parent=1 // loop_pre_header
      _
    $region3: #{tpu_custom_call.1} parent=1 // loop_header
      %s21 = sphi 0, %s25
      %p22 = scmp.ge.s32.totalorder %s21, 6
      %s31 = sphi 0, %s33
      %s34 = sphi 0, %s31
      %s35 = sphi 0, %s34
      %s51 = sphi 0, %s35
      %s55 = sphi 0, %s55
      %s57 = sphi 0, %s55
      %s58 = sphi 0, %s57
      %s72 = sphi 0, %s58
      %s76 = sphi 0, %s76
      %s78 = sphi 0, %s76
      %s79 = sphi 0, %s78
      %s93 = sphi 0, %s79
      %s99 = sphi 0, %s101
      %s102 = sphi 0, %s99
      %s103 = sphi 0, %s102
      %s119 = sphi 0, %s103
      %s125 = sphi 0, %s127
      %s128 = sphi 0, %s125
      %s129 = sphi 0, %s128
      %s145 = sphi 0, %s129
    $region4: #{tpu_custom_call.1} parent=1 // loop_header_branch
      %24 = sbr.rel (%p22) target = $region8
    $region5: #{tpu_custom_call.1} parent=1 // loop_body
      %s26 = ssub.s32 %s21, 1
      %s27 = ssub.s32 %s21, 2
      %s28 = sadd.s32 %s21, 1
      %s29 = ssub.s32 %s21, %s28
      %p30 = scmp.eq.s32.totalorder %s29, 0
      %s32 = sadd.s32 %s31, 1
      %s33 = scalar_select %p30, %s31, %s32
      %p36 = pneg %p30
      %p37 = scmp.eq.s32.totalorder %s21, 3
      %p38 = por %p36, %p37
      %p39 = scmp.ne.s32.totalorder %s31, %s34
      %p40 = scmp.eq.s32.totalorder %s21, 0
      %p41 = por %p39, %p40
      %p42 = scmp.ne.s32.totalorder %s31, %s34
      %p43 = scmp.eq.s32.totalorder %s26, 3
      %p44 = por %p42, %p43
      %p45 = scmp.ne.s32.totalorder %s34, %s35
      %p46 = scmp.eq.s32.totalorder %s26, 0
      %p47 = por %p45, %p46
      %p48 = scmp.ne.s32.totalorder %s34, %s35
      %p49 = scmp.eq.s32.totalorder %s27, 3
      %p50 = por %p48, %p49
      %p52 = scmp.ne.s32.totalorder %s35, %s51
      %p53 = scmp.eq.s32.totalorder %s27, 0
      %p54 = por %p52, %p53
      %s56 = sadd.s32 %s55, 1
      %p59 = scmp.eq.s32.totalorder %s21, 3
      %p60 = scmp.ne.s32.totalorder %s55, %s57
      %p61 = scmp.eq.s32.totalorder %s21, 0
      %p62 = por %p60, %p61
      %p63 = scmp.ne.s32.totalorder %s55, %s57
      %p64 = scmp.eq.s32.totalorder %s26, 3
      %p65 = por %p63, %p64
      %p66 = scmp.ne.s32.totalorder %s57, %s58
      %p67 = scmp.eq.s32.totalorder %s26, 0
      %p68 = por %p66, %p67
      %p69 = scmp.ne.s32.totalorder %s57, %s58
      %p70 = scmp.eq.s32.totalorder %s27, 3
      %p71 = por %p69, %p70
      %p73 = scmp.ne.s32.totalorder %s58, %s72
      %p74 = scmp.eq.s32.totalorder %s27, 0
      %p75 = por %p73, %p74
      %s77 = sadd.s32 %s76, 1
      %p80 = scmp.eq.s32.totalorder %s21, 3
      %p81 = scmp.ne.s32.totalorder %s76, %s78
      %p82 = scmp.eq.s32.totalorder %s21, 0
      %p83 = por %p81, %p82
      %p84 = scmp.ne.s32.totalorder %s76, %s78
      %p85 = scmp.eq.s32.totalorder %s26, 3
      %p86 = por %p84, %p85
      %p87 = scmp.ne.s32.totalorder %s78, %s79
      %p88 = scmp.eq.s32.totalorder %s26, 0
      %p89 = por %p87, %p88
      %p90 = scmp.ne.s32.totalorder %s78, %s79
      %p91 = scmp.eq.s32.totalorder %s27, 3
      %p92 = por %p90, %p91
      %p94 = scmp.ne.s32.totalorder %s79, %s93
      %p95 = scmp.eq.s32.totalorder %s27, 0
      %p96 = por %p94, %p95
      %s97 = ssub.s32 %s21, %s28
      %p98 = scmp.eq.s32.totalorder %s97, 0
      %s100 = sadd.s32 %s99, 1
      %s101 = scalar_select %p98, %s99, %s100
      %p104 = pneg %p98
      %p105 = scmp.eq.s32.totalorder %s21, 3
      %p106 = por %p104, %p105
      %p107 = scmp.ne.s32.totalorder %s99, %s102
      %p108 = scmp.eq.s32.totalorder %s21, 0
      %p109 = por %p107, %p108
      %p110 = scmp.ne.s32.totalorder %s99, %s102
      %p111 = scmp.eq.s32.totalorder %s26, 3
      %p112 = por %p110, %p111
      %p113 = scmp.ne.s32.totalorder %s102, %s103
      %p114 = scmp.eq.s32.totalorder %s26, 0
      %p115 = por %p113, %p114
      %p116 = scmp.ne.s32.totalorder %s102, %s103
      %p117 = scmp.eq.s32.totalorder %s27, 3
      %p118 = por %p116, %p117
      %p120 = scmp.ne.s32.totalorder %s103, %s119
      %p121 = scmp.eq.s32.totalorder %s27, 0
      %p122 = por %p120, %p121
      %s123 = ssub.s32 %s21, %s28
      %p124 = scmp.eq.s32.totalorder %s123, 0
      %s126 = sadd.s32 %s125, 1
      %s127 = scalar_select %p124, %s125, %s126
      %p130 = pneg %p124
      %p131 = scmp.eq.s32.totalorder %s21, 3
      %p132 = por %p130, %p131
      %p133 = scmp.ne.s32.totalorder %s125, %s128
      %p134 = scmp.eq.s32.totalorder %s21, 0
      %p135 = por %p133, %p134
      %p136 = scmp.ne.s32.totalorder %s125, %s128
      %p137 = scmp.eq.s32.totalorder %s26, 3
      %p138 = por %p136, %p137
      %p139 = scmp.ne.s32.totalorder %s128, %s129
      %p140 = scmp.eq.s32.totalorder %s26, 0
      %p141 = por %p139, %p140
      %p142 = scmp.ne.s32.totalorder %s128, %s129
      %p143 = scmp.eq.s32.totalorder %s27, 3
      %p144 = por %p142, %p143
      %p146 = scmp.ne.s32.totalorder %s129, %s145
      %p147 = scmp.eq.s32.totalorder %s27, 0
      %p148 = por %p146, %p147
      %p149 = scmp.le.s32.totalorder 1, %s21
      %p150 = scmp.lt.s32.totalorder %s21, 5
      %p151 = pnand %p149, %p150
      %p152 = pneg %p151
      // Predicated region
      $region9: #{tpu_custom_call.1} parent=5 // pred_check
        _
      $region10: #{tpu_custom_call.1} parent=5 // pred_check_branch
        %154 = sbr.rel (%p151) target = $region12
      $region11: #{tpu_custom_call.1} parent=5 // pred_region
        %s155 = ssub.s32 %s21, 1
        // Predicated region
        $region13: #{tpu_custom_call.1} parent=11 // pred_check
          %p156 = pneg %p68
        $region14: #{tpu_custom_call.1} parent=11 // pred_check_branch
          %158 = sbr.rel (%p156) target = $region16
        $region15: #{tpu_custom_call.1} parent=11 // pred_region
          %s160 = ssub.s32 2048, 2048
          %161 = vsyncadd [#allocation6], %s160
          %s162 = sshll.u32 [#allocation5], 4
          %s163 = int_to_ptr.vmem [resolvable:$true] %s162
          %168 = dma.hbm_to_vmem [thread:$0]  %s1, 2048, %s163, [#allocation6], 128, 128, 8
        $region16: #{tpu_custom_call.1} parent=11 // pred_fallthru
          _
        // Predicated region
        $region17: #{tpu_custom_call.1} parent=11 // pred_check
          %p169 = pneg %p89
        $region18: #{tpu_custom_call.1} parent=11 // pred_check_branch
          %171 = sbr.rel (%p169) target = $region20
        $region19: #{tpu_custom_call.1} parent=11 // pred_region
          %s173 = ssub.s32 2048, 2048
          %174 = vsyncadd [#allocation6], %s173
          %s175 = sshll.u32 [#allocation7], 4
          %s176 = int_to_ptr.vmem [resolvable:$true] %s175
          %181 = dma.hbm_to_vmem [thread:$0]  %s2, 2048, %s176, [#allocation6], 128, 128, 8
        $region20: #{tpu_custom_call.1} parent=11 // pred_fallthru
          _
      $region12: #{tpu_custom_call.1} parent=5 // pred_fallthru
        _
      %p182 = scmp.lt.s32.totalorder %s21, 4
      // Predicated region
      $region21: #{tpu_custom_call.1} parent=5 // pred_check
        %p183 = pneg %p182
      $region22: #{tpu_custom_call.1} parent=5 // pred_check_branch
        %185 = sbr.rel (%p183) target = $region24
      $region23: #{tpu_custom_call.1} parent=5 // pred_region
        // Predicated region
        $region25: #{tpu_custom_call.1} parent=23 // pred_check
          %p186 = pneg %p41
        $region26: #{tpu_custom_call.1} parent=23 // pred_check_branch
          %188 = sbr.rel (%p186) target = $region28
        $region27: #{tpu_custom_call.1} parent=23 // pred_region
          %s189 = sand.u32 %s31, 1
          %s190 = scalar_lea.sflag [#allocation3], %s189
          %s191 = sand.u32 %s31, 1
          %s192 = smul.addr %s191, 32
          %s193 = scalar_lea.vmem [#allocation2], %s192
          %s194 = smul.u32 4, %s21
          %s196 = ssub.s32 512, 512
          %197 = vsyncadd %s190, %s196
          %s198 = smul.addr %s194, 128
          %s199 = scalar_lea.hbm %s0, %s198
          %s200 = sshll.u32 %s193, 4
          %s201 = int_to_ptr.vmem [resolvable:$true] %s200
          %206 = dma.hbm_to_vmem [thread:$0]  %s199, 512, %s201, %s190, 128, 128, 8
        $region28: #{tpu_custom_call.1} parent=23 // pred_fallthru
          _
      $region24: #{tpu_custom_call.1} parent=5 // pred_fallthru
        _
      %p207 = scmp.le.s32.totalorder 1, %s21
      %p208 = scmp.lt.s32.totalorder %s21, 5
      %p209 = pnand %p207, %p208
      %p210 = pneg %p209
      // Predicated region
      $region29: #{tpu_custom_call.1} parent=5 // pred_check
        _
      $region30: #{tpu_custom_call.1} parent=5 // pred_check_branch
        %212 = sbr.rel (%p209) target = $region32
      $region31: #{tpu_custom_call.1} parent=5 // pred_region
        %s213 = ssub.s32 %s21, 1
        %s214 = sand.u32 %s34, 1
        %s215 = scalar_lea.sflag [#allocation3], %s214
        %s216 = sand.u32 %s34, 1
        %s217 = smul.addr %s216, 32
        %s218 = scalar_lea.vmem [#allocation2], %s217
        // Predicated region
        $region33: #{tpu_custom_call.1} parent=31 // pred_check
          %p219 = pneg %p47
        $region34: #{tpu_custom_call.1} parent=31 // pred_check_branch
          %221 = sbr.rel (%p219) target = $region36
        $region35: #{tpu_custom_call.1} parent=31 // pred_region
          %222 = dma.done %s215, 512
        $region36: #{tpu_custom_call.1} parent=31 // pred_fallthru
          _
        // Predicated region
        $region37: #{tpu_custom_call.1} parent=31 // pred_check
          %p223 = pneg %p68
        $region38: #{tpu_custom_call.1} parent=31 // pred_check_branch
          %225 = sbr.rel (%p223) target = $region40
        $region39: #{tpu_custom_call.1} parent=31 // pred_region
          %226 = dma.done [#allocation6], 2048
        $region40: #{tpu_custom_call.1} parent=31 // pred_fallthru
          _
        // Predicated region
        $region41: #{tpu_custom_call.1} parent=31 // pred_check
          %p227 = pneg %p89
        $region42: #{tpu_custom_call.1} parent=31 // pred_check_branch
          %229 = sbr.rel (%p227) target = $region44
        $region43: #{tpu_custom_call.1} parent=31 // pred_region
          %230 = dma.done [#allocation6], 2048
        $region44: #{tpu_custom_call.1} parent=31 // pred_fallthru
          _
        %s231 = sand.u32 %s34, 1
        %s232 = scalar_lea.sflag [#allocation3], %s231
        %s233 = sand.u32 %s34, 1
        %s234 = smul.addr %s233, 32
        %s235 = scalar_lea.vmem [#allocation2], %s234
        %p236 = pneg %p47
        %p237 = pneg %p44
        %p238 = pneg %p68
        %p239 = pneg %p65
        %p240 = pneg %p89
        %p241 = pneg %p86
        %p242 = pneg %p115
        %p243 = pneg %p112
        %s244 = sand.u32 %s102, 1
        %s245 = scalar_lea.sflag [#allocation4], %s244
        %s246 = sand.u32 %s102, 1
        %s247 = smul.addr %s246, 32
        %s248 = scalar_lea.vmem [#allocation8], %s247
        %p249 = pneg %p141
        %p250 = pneg %p138
        %s251 = sand.u32 %s128, 1
        %s252 = scalar_lea.sflag [#allocation10], %s251
        %s253 = sand.u32 %s128, 1
        %s254 = smul.addr %s253, 32
        %s255 = scalar_lea.vmem [#allocation9], %s254
        %s256 = smul.u32 4, %s26
        %s257 = smul.u32 4, %s26
        %s258 = smul.u32 4, %s26
        %v259 = vld [vmem:[%s218] sm:$0xff]
        %v260 = vld [vmem:[%s218 + $0x8] sm:$0xff]
        %v261 = vld [vmem:[%s218 + $0x10] sm:$0xff]
        %v262 = vld [vmem:[%s218 + $0x18] sm:$0xff]
        %v263 = vld [vmem:[#allocation5] sm:$0xff]
        %v264 = vld [vmem:[#allocation5 + $0x8] sm:$0xff]
        %v265 = vld [vmem:[#allocation5 + $0x10] sm:$0xff]
        %v266 = vld [vmem:[#allocation5 + $0x18] sm:$0xff]
        %v267 = vld [vmem:[#allocation5 + $0x20] sm:$0xff]
        %v268 = vld [vmem:[#allocation5 + $0x28] sm:$0xff]
        %v269 = vld [vmem:[#allocation5 + $0x30] sm:$0xff]
        %v270 = vld [vmem:[#allocation5 + $0x38] sm:$0xff]
        %v271 = vld [vmem:[#allocation5 + $0x40] sm:$0xff]
        %v272 = vld [vmem:[#allocation5 + $0x48] sm:$0xff]
        %v273 = vld [vmem:[#allocation5 + $0x50] sm:$0xff]
        %v274 = vld [vmem:[#allocation5 + $0x58] sm:$0xff]
        %v275 = vld [vmem:[#allocation5 + $0x60] sm:$0xff]
        %v276 = vld [vmem:[#allocation5 + $0x68] sm:$0xff]
        %v277 = vld [vmem:[#allocation5 + $0x70] sm:$0xff]
        %v278 = vld [vmem:[#allocation5 + $0x78] sm:$0xff]
        %279 = vmatprep.subr.mxu0 0.0
        %280 = vmatpush1.msra.mxu0 %v278
        %281 = vmatprep.subr.mxu0 0.0
        %282 = vmatpush1.msra.mxu0 %v277
        %283 = vmatprep.subr.mxu0 0.0
        %284 = vmatpush1.msra.mxu0 %v276
        %285 = vmatprep.subr.mxu0 0.0
        %286 = vmatpush1.msra.mxu0 %v275
        %287 = vmatprep.subr.mxu0 0.0
        %288 = vmatpush1.msra.mxu0 %v274
        %289 = vmatprep.subr.mxu0 0.0
        %290 = vmatpush1.msra.mxu0 %v273
        %291 = vmatprep.subr.mxu0 0.0
        %292 = vmatpush1.msra.mxu0 %v272
        %293 = vmatprep.subr.mxu0 0.0
        %294 = vmatpush1.msra.mxu0 %v271
        %295 = vmatprep.subr.mxu0 0.0
        %296 = vmatpush1.msra.mxu0 %v270
        %297 = vmatprep.subr.mxu0 0.0
        %298 = vmatpush1.msra.mxu0 %v269
        %299 = vmatprep.subr.mxu0 0.0
        %300 = vmatpush1.msra.mxu0 %v268
        %301 = vmatprep.subr.mxu0 0.0
        %302 = vmatpush1.msra.mxu0 %v267
        %303 = vmatprep.subr.mxu0 0.0
        %304 = vmatpush1.msra.mxu0 %v266
        %305 = vmatprep.subr.mxu0 0.0
        %306 = vmatpush1.msra.mxu0 %v265
        %307 = vmatprep.subr.mxu0 0.0
        %308 = vmatpush1.msra.mxu0 %v264
        %309 = vmatprep.subr.mxu0 0.0
        %310 = vmatpush1.msra.mxu0 %v263
        %311 = vmatprep.subr.mxu0 0.0
        %312 = vmatpush2.msra.mxu0 0.0
        %313 = vmatprep.subr.mxu0 0.0
        %314 = vmatpush2.msra.mxu0 0.0
        %315 = vmatprep.subr.mxu0 0.0
        %316 = vmatpush2.msra.mxu0 0.0
        %317 = vmatprep.subr.mxu0 0.0
        %318 = vmatpush2.msra.mxu0 0.0
        %319 = vmatprep.subr.mxu0 0.0
        %320 = vmatpush2.msra.mxu0 0.0
        %321 = vmatprep.subr.mxu0 0.0
        %322 = vmatpush2.msra.mxu0 0.0
        %323 = vmatprep.subr.mxu0 0.0
        %324 = vmatpush2.msra.mxu0 0.0
        %325 = vmatprep.subr.mxu0 0.0
        %326 = vmatpush2.msra.mxu0 0.0
        %327 = vmatprep.subr.mxu0 0.0
        %328 = vmatpush2.msra.mxu0 0.0
        %329 = vmatprep.subr.mxu0 0.0
        %330 = vmatpush2.msra.mxu0 0.0
        %331 = vmatprep.subr.mxu0 0.0
        %332 = vmatpush2.msra.mxu0 0.0
        %333 = vmatprep.subr.mxu0 0.0
        %334 = vmatpush2.msra.mxu0 0.0
        %335 = vmatprep.subr.mxu0 0.0
        %336 = vmatpush2.msra.mxu0 0.0
        %337 = vmatprep.subr.mxu0 0.0
        %338 = vmatpush2.msra.mxu0 0.0
        %339 = vmatprep.subr.mxu0 0.0
        %340 = vmatpush2.msra.mxu0 0.0
        %341 = vmatprep.subr.mxu0 0.0
        %342 = vmatpush2.msra.mxu0 0.0
        %343 = vmatprep.mubr.f32.mxu0 0.0
        %344 = vmatmul.mubr.f32.gmra.mxu0 %v259
        %v345 = vpop.f32.mrf.mxu0
        %v346 = vadd.f32 0.0, %v345
        %v347 = vpop.f32.mrf.mxu0
        %348 = vmatprep.mubr.f32.mxu0 0.0
        %349 = vmatmul.mubr.f32.gmra.mxu0 %v260
        %v350 = vpop.f32.mrf.mxu0
        %v351 = vadd.f32 0.0, %v350
        %v352 = vpop.f32.mrf.mxu0
        %353 = vmatprep.mubr.f32.mxu0 0.0
        %354 = vmatmul.mubr.f32.gmra.mxu0 %v261
        %v355 = vpop.f32.mrf.mxu0
        %v356 = vadd.f32 0.0, %v355
        %v357 = vpop.f32.mrf.mxu0
        %358 = vmatprep.mubr.f32.mxu0 0.0
        %359 = vmatmul.mubr.f32.gmra.mxu0 %v262
        %v360 = vpop.f32.mrf.mxu0
        %v361 = vadd.f32 0.0, %v360
        %v362 = vpop.f32.mrf.mxu0
        %363 = vdwg.mxu0
        %v364 = vmax.f32 %v346, 0.0
        %v365 = vmax.f32 %v351, 0.0
        %v366 = vmax.f32 %v356, 0.0
        %v367 = vmax.f32 %v361, 0.0
        %368 = vst [vmem:[%s248] sm:$0xff] %v364
        %369 = vst [vmem:[%s248 + $0x8] sm:$0xff] %v365
        %370 = vst [vmem:[%s248 + $0x10] sm:$0xff] %v366
        %371 = vst [vmem:[%s248 + $0x18] sm:$0xff] %v367
        %v372 = vld [vmem:[#allocation7] sm:$0xff]
        %v373 = vld [vmem:[#allocation7 + $0x8] sm:$0xff]
        %v374 = vld [vmem:[#allocation7 + $0x10] sm:$0xff]
        %v375 = vld [vmem:[#allocation7 + $0x18] sm:$0xff]
        %v376 = vld [vmem:[#allocation7 + $0x20] sm:$0xff]
        %v377 = vld [vmem:[#allocation7 + $0x28] sm:$0xff]
        %v378 = vld [vmem:[#allocation7 + $0x30] sm:$0xff]
        %v379 = vld [vmem:[#allocation7 + $0x38] sm:$0xff]
        %v380 = vld [vmem:[#allocation7 + $0x40] sm:$0xff]
        %v381 = vld [vmem:[#allocation7 + $0x48] sm:$0xff]
        %v382 = vld [vmem:[#allocation7 + $0x50] sm:$0xff]
        %v383 = vld [vmem:[#allocation7 + $0x58] sm:$0xff]
        %v384 = vld [vmem:[#allocation7 + $0x60] sm:$0xff]
        %v385 = vld [vmem:[#allocation7 + $0x68] sm:$0xff]
        %v386 = vld [vmem:[#allocation7 + $0x70] sm:$0xff]
        %v387 = vld [vmem:[#allocation7 + $0x78] sm:$0xff]
        %388 = vmatprep.subr.mxu0 0.0
        %389 = vmatpush1.msra.mxu0 %v387
        %390 = vmatprep.subr.mxu0 0.0
        %391 = vmatpush1.msra.mxu0 %v386
        %392 = vmatprep.subr.mxu0 0.0
        %393 = vmatpush1.msra.mxu0 %v385
        %394 = vmatprep.subr.mxu0 0.0
        %395 = vmatpush1.msra.mxu0 %v384
        %396 = vmatprep.subr.mxu0 0.0
        %397 = vmatpush1.msra.mxu0 %v383
        %398 = vmatprep.subr.mxu0 0.0
        %399 = vmatpush1.msra.mxu0 %v382
        %400 = vmatprep.subr.mxu0 0.0
        %401 = vmatpush1.msra.mxu0 %v381
        %402 = vmatprep.subr.mxu0 0.0
        %403 = vmatpush1.msra.mxu0 %v380
        %404 = vmatprep.subr.mxu0 0.0
        %405 = vmatpush1.msra.mxu0 %v379
        %406 = vmatprep.subr.mxu0 0.0
        %407 = vmatpush1.msra.mxu0 %v378
        %408 = vmatprep.subr.mxu0 0.0
        %409 = vmatpush1.msra.mxu0 %v377
        %410 = vmatprep.subr.mxu0 0.0
        %411 = vmatpush1.msra.mxu0 %v376
        %412 = vmatprep.subr.mxu0 0.0
        %413 = vmatpush1.msra.mxu0 %v375
        %414 = vmatprep.subr.mxu0 0.0
        %415 = vmatpush1.msra.mxu0 %v374
        %416 = vmatprep.subr.mxu0 0.0
        %417 = vmatpush1.msra.mxu0 %v373
        %418 = vmatprep.subr.mxu0 0.0
        %419 = vmatpush1.msra.mxu0 %v372
        %420 = vmatprep.subr.mxu0 0.0
        %421 = vmatpush2.msra.mxu0 0.0
        %422 = vmatprep.subr.mxu0 0.0
        %423 = vmatpush2.msra.mxu0 0.0
        %424 = vmatprep.subr.mxu0 0.0
        %425 = vmatpush2.msra.mxu0 0.0
        %426 = vmatprep.subr.mxu0 0.0
        %427 = vmatpush2.msra.mxu0 0.0
        %428 = vmatprep.subr.mxu0 0.0
        %429 = vmatpush2.msra.mxu0 0.0
        %430 = vmatprep.subr.mxu0 0.0
        %431 = vmatpush2.msra.mxu0 0.0
        %432 = vmatprep.subr.mxu0 0.0
        %433 = vmatpush2.msra.mxu0 0.0
        %434 = vmatprep.subr.mxu0 0.0
        %435 = vmatpush2.msra.mxu0 0.0
        %436 = vmatprep.subr.mxu0 0.0
        %437 = vmatpush2.msra.mxu0 0.0
        %438 = vmatprep.subr.mxu0 0.0
        %439 = vmatpush2.msra.mxu0 0.0
        %440 = vmatprep.subr.mxu0 0.0
        %441 = vmatpush2.msra.mxu0 0.0
        %442 = vmatprep.subr.mxu0 0.0
        %443 = vmatpush2.msra.mxu0 0.0
        %444 = vmatprep.subr.mxu0 0.0
        %445 = vmatpush2.msra.mxu0 0.0
        %446 = vmatprep.subr.mxu0 0.0
        %447 = vmatpush2.msra.mxu0 0.0
        %448 = vmatprep.subr.mxu0 0.0
        %449 = vmatpush2.msra.mxu0 0.0
        %450 = vmatprep.subr.mxu0 0.0
        %451 = vmatpush2.msra.mxu0 0.0
        %452 = vmatprep.mubr.f32.mxu0 0.0
        %453 = vmatmul.mubr.f32.gmra.mxu0 %v364
        %v454 = vpop.f32.mrf.mxu0
        %v455 = vadd.f32 0.0, %v454
        %v456 = vpop.f32.mrf.mxu0
        %457 = vmatprep.mubr.f32.mxu0 0.0
        %458 = vmatmul.mubr.f32.gmra.mxu0 %v365
        %v459 = vpop.f32.mrf.mxu0
        %v460 = vadd.f32 0.0, %v459
        %v461 = vpop.f32.mrf.mxu0
        %462 = vmatprep.mubr.f32.mxu0 0.0
        %463 = vmatmul.mubr.f32.gmra.mxu0 %v366
        %v464 = vpop.f32.mrf.mxu0
        %v465 = vadd.f32 0.0, %v464
        %v466 = vpop.f32.mrf.mxu0
        %467 = vmatprep.mubr.f32.mxu0 0.0
        %468 = vmatmul.mubr.f32.gmra.mxu0 %v367
        %v469 = vpop.f32.mrf.mxu0
        %v470 = vadd.f32 0.0, %v469
        %v471 = vpop.f32.mrf.mxu0
        %472 = vdwg.mxu0
        %v473 = vmax.f32 %v455, 0.0
        %v474 = vmax.f32 %v460, 0.0
        %v475 = vmax.f32 %v465, 0.0
        %v476 = vmax.f32 %v470, 0.0
        %477 = vst [vmem:[%s255] sm:$0xff] %v473
        %478 = vst [vmem:[%s255 + $0x8] sm:$0xff] %v474
        %479 = vst [vmem:[%s255 + $0x10] sm:$0xff] %v475
        %480 = vst [vmem:[%s255 + $0x18] sm:$0xff] %v476
        %s481 = sand.u32 %s102, 1
        %s482 = scalar_lea.sflag [#allocation4], %s481
        %s483 = sand.u32 %s102, 1
        %s484 = smul.addr %s483, 32
        %s485 = scalar_lea.vmem [#allocation8], %s484
        %s486 = sand.u32 %s128, 1
        %s487 = scalar_lea.sflag [#allocation10], %s486
        %s488 = sand.u32 %s128, 1
        %s489 = smul.addr %s488, 32
        %s490 = scalar_lea.vmem [#allocation9], %s489
        // Predicated region
        $region45: #{tpu_custom_call.1} parent=31 // pred_check
          %p491 = pneg %p112
        $region46: #{tpu_custom_call.1} parent=31 // pred_check_branch
          %493 = sbr.rel (%p491) target = $region48
        $region47: #{tpu_custom_call.1} parent=31 // pred_region
          %s494 = smul.u32 4, %s26
          %s496 = ssub.s32 512, 512
          %497 = vsyncadd %s482, %s496
          %s498 = smul.addr %s494, 128
          %s499 = scalar_lea.hbm %s3, %s498
          %s500 = sshll.u32 %s485, 4
          %s501 = int_to_ptr.vmem [resolvable:$true] %s500
          %506 = dma.vmem_to_hbm [thread:$0]  %s501, 512, %s499, %s482, 128, 128, 8
        $region48: #{tpu_custom_call.1} parent=31 // pred_fallthru
          _
        // Predicated region
        $region49: #{tpu_custom_call.1} parent=31 // pred_check
          %p507 = pneg %p138
        $region50: #{tpu_custom_call.1} parent=31 // pred_check_branch
          %509 = sbr.rel (%p507) target = $region52
        $region51: #{tpu_custom_call.1} parent=31 // pred_region
          %s510 = smul.u32 4, %s26
          %s512 = ssub.s32 512, 512
          %513 = vsyncadd %s487, %s512
          %s514 = smul.addr %s510, 128
          %s515 = scalar_lea.hbm %s4, %s514
          %s516 = sshll.u32 %s490, 4
          %s517 = int_to_ptr.vmem [resolvable:$true] %s516
          %522 = dma.vmem_to_hbm [thread:$0]  %s517, 512, %s515, %s487, 128, 128, 8
        $region52: #{tpu_custom_call.1} parent=31 // pred_fallthru
          _
      $region32: #{tpu_custom_call.1} parent=5 // pred_fallthru
        _
      %p523 = scmp.le.s32.totalorder 2, %s21
      // Predicated region
      $region53: #{tpu_custom_call.1} parent=5 // pred_check
        %p524 = pneg %p523
      $region54: #{tpu_custom_call.1} parent=5 // pred_check_branch
        %526 = sbr.rel (%p524) target = $region56
      $region55: #{tpu_custom_call.1} parent=5 // pred_region
        %s527 = ssub.s32 %s21, 2
        // Predicated region
        $region57: #{tpu_custom_call.1} parent=55 // pred_check
          %p528 = pneg %p118
        $region58: #{tpu_custom_call.1} parent=55 // pred_check_branch
          %530 = sbr.rel (%p528) target = $region60
        $region59: #{tpu_custom_call.1} parent=55 // pred_region
          %s531 = sand.u32 %s103, 1
          %s532 = scalar_lea.sflag [#allocation4], %s531
          %s533 = sand.u32 %s103, 1
          %s534 = smul.addr %s533, 32
          %s535 = scalar_lea.vmem [#allocation8], %s534
          %536 = dma.done %s532, 512
        $region60: #{tpu_custom_call.1} parent=55 // pred_fallthru
          _
        // Predicated region
        $region61: #{tpu_custom_call.1} parent=55 // pred_check
          %p537 = pneg %p144
        $region62: #{tpu_custom_call.1} parent=55 // pred_check_branch
          %539 = sbr.rel (%p537) target = $region64
        $region63: #{tpu_custom_call.1} parent=55 // pred_region
          %s540 = sand.u32 %s129, 1
          %s541 = scalar_lea.sflag [#allocation10], %s540
          %s542 = sand.u32 %s129, 1
          %s543 = smul.addr %s542, 32
          %s544 = scalar_lea.vmem [#allocation9], %s543
          %545 = dma.done %s541, 512
        $region64: #{tpu_custom_call.1} parent=55 // pred_fallthru
          _
      $region56: #{tpu_custom_call.1} parent=5 // pred_fallthru
        _
    $region6: #{tpu_custom_call.1} parent=1 // loop_footer
      %s25 = sadd.s32 1, %s21
    $region7: #{tpu_custom_call.1} parent=1 // loop_footer_branch
      %20 = sbr.rel target = $region3
    $region8: #{tpu_custom_call.1} parent=1 // loop_exit
      _
    %546 = vsyncpa [#allocation3], 1
    %s547 = scalar_lea.sflag [#allocation3], 1
    %548 = vsyncpa %s547, 1
    %549 = vsyncpa [#allocation6], 1
    %550 = vsyncpa [#allocation4], 1
    %s551 = scalar_lea.sflag [#allocation4], 1
    %552 = vsyncpa %s551, 1
    %553 = vsyncpa [#allocation10], 1
    %s554 = scalar_lea.sflag [#allocation10], 1
    %555 = vsyncpa %s554, 1

</llo_original>
